<compile_context>
chip_gen: v7x
topology: tpu7x:2x2x1
jax: 0.10.0
libtpu: 0.0.40
codegen_flags: <defaults>
</compile_context>

<pallas_src>
import jax
import jax.numpy as jnp
from jax import lax
from jax.experimental import pallas as pl
from jax.experimental.pallas import tpu as pltpu


def lstm_cls_kernel(x_ref,          # [S*B, E]  time-major flattened activations
                    wih_cat_ref,    # [E, 8H]   concat(wih_fwd, wih_bwd)
                    b_cat_ref,      # [1, 8H]   concat(b_fwd, b_bwd)  (b_ih + b_hh)
                    whh_f_ref,      # [H, 4H]   forward recurrent weights
                    wcls_f_ref,     # [H, L]    classifier (forward half)
                    wcls_b_ref,     # [H, L]    classifier (backward half)
                    bcls_ref,       # [1, L]
                    out_ref):       # [B, L]
    B, _ = out_ref.shape
    SB, _ = x_ref.shape
    S = SB // B
    H = whh_f_ref.shape[0]
    G = 4 * H

    # Hoisted batched input projection (both directions), bias folded in.
    gx = (jnp.dot(x_ref[...], wih_cat_ref[...],
                  preferred_element_type=jnp.float32)
          + b_cat_ref[...])                                  # (S*B, 8H)

    whh_f = whh_f_ref[...]

    def gate_combine(gates, c_prev=None):
        # 4H fits one vreg lane width: 2 full-width EUP passes + lane slices
        # instead of 4 separate 32-lane sliced activations.
        # PyTorch gate order: i, f, g, o.
        sig = jax.nn.sigmoid(gates)
        th = jnp.tanh(gates)
        i = sig[:, 0 * H:1 * H]
        f = sig[:, 1 * H:2 * H]
        g = th[:, 2 * H:3 * H]
        o = sig[:, 3 * H:4 * H]
        c_new = i * g if c_prev is None else f * c_prev + i * g
        h_new = o * jnp.tanh(c_new)
        return h_new, c_new

    # ---- forward direction, fully unrolled (S static & small) ----
    # t = 0: h0 = c0 = 0  ->  no h @ whh_f, no f*c term.
    h, c = gate_combine(gx[0 * B:1 * B, 0:G])
    for t in range(1, S):
        gates = gx[t * B:(t + 1) * B, 0:G] + jnp.dot(
            h, whh_f, preferred_element_type=jnp.float32)
        h, c = gate_combine(gates, c)
    h_fwd = h

    # ---- backward direction ----
    # Only output[:, -1, :] is consumed: the reverse LSTM's state at t = S-1
    # is its *first* step from zero state -> no h @ whh_b, no f*c term.
    h_bwd, _ = gate_combine(gx[(S - 1) * B:S * B, G:2 * G])

    # ---- split classifier (no (B, 2H) lane concat) ----
    logits = (jnp.dot(h_fwd, wcls_f_ref[...], preferred_element_type=jnp.float32)
              + jnp.dot(h_bwd, wcls_b_ref[...], preferred_element_type=jnp.float32)
              + bcls_ref[...])
    out_ref[...] = logits.astype(out_ref.dtype)


def rnn_classifier_forward(seq_output, params):
    """seq_output: [B, S, E] float32 (synthetic backbone output)."""
    B, S, E = seq_output.shape
    H = params["whh_f"].shape[0]
    L = params["wcls"].shape[1]

    # Time-major flatten so each recurrence step reads a contiguous sublane
    # block of the projected gates (rows ordered (t, b)).
    x_tm = jnp.transpose(seq_output, (1, 0, 2)).reshape(S * B, E)

    # Repack weights for the kernel (done once; trivially cheap).
    wih_cat = jnp.concatenate([params["wih_f"], params["wih_b"]], axis=1)  # (E, 8H)
    b_cat = jnp.concatenate([params["b_f"], params["b_b"]], axis=1)        # (1, 8H)
    wcls_f = params["wcls"][:H]                                            # (H, L)
    wcls_b = params["wcls"][H:]                                            # (H, L)

    vmem = pl.BlockSpec(memory_space=pltpu.MemorySpace.VMEM)
    fn = pl.pallas_call(
        lstm_cls_kernel,
        out_shape=jax.ShapeDtypeStruct((B, L), jnp.float32),
        in_specs=[vmem] * 7,
        out_specs=vmem,
    )
    return fn(x_tm, wih_cat, b_cat, params["whh_f"], wcls_f, wcls_b,
              params["bcls"])


def reference_forward(seq_output, params):
    """Pure-JAX reference matching PyTorch nn.LSTM(bidirectional=True,
    batch_first=True) -> output[:, -1, :] -> Linear (full scans, no shortcuts)."""
    B, S, E = seq_output.shape
    H = params["whh_f"].shape[0]

    def cell(x_t, h, c, wih, whh, b):
        gates = x_t @ wih + h @ whh + b
        i = jax.nn.sigmoid(gates[:, 0 * H:1 * H])
        f = jax.nn.sigmoid(gates[:, 1 * H:2 * H])
        g = jnp.tanh(gates[:, 2 * H:3 * H])
        o = jax.nn.sigmoid(gates[:, 3 * H:4 * H])
        c_new = f * c + i * g
        return o * jnp.tanh(c_new), c_new

    h0 = jnp.zeros((B, H), jnp.float32)
    c0 = jnp.zeros((B, H), jnp.float32)
    x_sbe = jnp.transpose(seq_output, (1, 0, 2))  # [S, B, E]

    def scan_dir(x_seq, wih, whh, b):
        def step(carry, x_t):
            h, c = carry
            h, c = cell(x_t, h, c, wih, whh, b)
            return (h, c), h
        (_, _), hs = lax.scan(step, (h0, c0), x_seq)
        return hs  # [S, B, H]

    hs_f = scan_dir(x_sbe, params["wih_f"], params["whh_f"], params["b_f"])
    hs_b_rev = scan_dir(x_sbe[::-1], params["wih_b"], params["whh_b"], params["b_b"])
    hs_b = hs_b_rev[::-1]                          # hs_b[t] = bwd state at time t

    out_last = jnp.concatenate([hs_f[-1], hs_b[-1]], axis=-1)   # output[:, -1, :]
    return out_last @ params["wcls"] + params["bcls"]


def init_params(key, E, H, L):
    k = 1.0 / jnp.sqrt(H)
    keys = jax.random.split(key, 10)
    u = lambda kk, shape: jax.random.uniform(kk, shape, jnp.float32, -k, k)
    return {
        # forward direction (weights stored pre-transposed for x @ W)
        "wih_f": u(keys[0], (E, 4 * H)),
        "whh_f": u(keys[1], (H, 4 * H)),
        "b_f":   u(keys[2], (1, 4 * H)) + u(keys[3], (1, 4 * H)),  # b_ih + b_hh
        # backward direction
        "wih_b": u(keys[4], (E, 4 * H)),
        "whh_b": u(keys[5], (H, 4 * H)),   # kept for the reference; the kernel
                                           # never needs it (zero-state shortcut)
        "b_b":   u(keys[6], (1, 4 * H)) + u(keys[7], (1, 4 * H)),
        # classifier: Linear(2H, L)
        "wcls":  u(keys[8], (2 * H, L)),
        "bcls":  u(keys[9], (1, L)),
    }


if __name__ == "__main__":
    B, S, E, H, L = 2, 8, 32, 32, 4   # batch, seq, embed, rnn_hidden_dim, num_labels

    key = jax.random.PRNGKey(0)
    k_x, k_p = jax.random.split(key)

    # Synthetic backbone output (stands in for AutoModel(...)[0]).
    seq_output = jax.random.normal(k_x, (B, S, E), jnp.float32)
    params = init_params(k_p, E, H, L)

    logits = rnn_classifier_forward(seq_output, params)
    logits = jax.block_until_ready(logits)

    ref = reference_forward(seq_output, params)
    assert logits.shape == (B, L)
    assert jnp.allclose(logits, ref, atol=1e-5, rtol=1e-5), (logits, ref)

    print("KERNEL_OK")
</pallas_src>

<mosaic_0001>
module attributes {stable_mosaic.version = 11 : i64} {
  func.func @lstm_cls_kernel(%arg0: memref<16x32xf32, #tpu.memory_space<vmem>>, %arg1: memref<32x256xf32, #tpu.memory_space<vmem>>, %arg2: memref<1x256xf32, #tpu.memory_space<vmem>>, %arg3: memref<32x128xf32, #tpu.memory_space<vmem>>, %arg4: memref<32x4xf32, #tpu.memory_space<vmem>>, %arg5: memref<32x4xf32, #tpu.memory_space<vmem>>, %arg6: memref<1x4xf32, #tpu.memory_space<vmem>>, %arg7: memref<2x4xf32, #tpu.memory_space<vmem>>) attributes {dimension_semantics = [], scalar_prefetch = 0 : i64, scratch_operands = 0 : i64, tpu.core_type = #tpu.core_type<tc>} {
    %c0 = arith.constant 0 : index
    %c0_0 = arith.constant 0 : index
    %0 = vector.load %arg0[%c0, %c0_0] : memref<16x32xf32, #tpu.memory_space<vmem>>, vector<16x32xf32>
    %c0_1 = arith.constant 0 : index
    %c0_2 = arith.constant 0 : index
    %1 = vector.load %arg1[%c0_1, %c0_2] : memref<32x256xf32, #tpu.memory_space<vmem>>, vector<32x256xf32>
    %cst = arith.constant dense<0.000000e+00> : vector<16x256xf32>
    %2 = tpu.matmul %0, %1, %cst {dimension_numbers = #tpu.dot_dimension_numbers<[1], [0], [0], [1], [0, 0, 1, 1], [], []>} : vector<16x32xf32>, vector<32x256xf32>, vector<16x256xf32> -> vector<16x256xf32>
    %c0_3 = arith.constant 0 : index
    %c0_4 = arith.constant 0 : index
    %3 = vector.load %arg2[%c0_3, %c0_4] : memref<1x256xf32, #tpu.memory_space<vmem>>, vector<1x256xf32>
    %4 = vector.broadcast %3 : vector<1x256xf32> to vector<16x256xf32>
    %5 = arith.addf %2, %4 : vector<16x256xf32>
    %c0_5 = arith.constant 0 : index
    %c0_6 = arith.constant 0 : index
    %6 = vector.load %arg3[%c0_5, %c0_6] : memref<32x128xf32, #tpu.memory_space<vmem>>, vector<32x128xf32>
    %7 = vector.extract_strided_slice %5 {offsets = [0, 0], sizes = [2, 128], strides = [1, 1]} : vector<16x256xf32> to vector<2x128xf32>
    %8 = arith.negf %7 : vector<2x128xf32>
    %9 = math.exp %8 : vector<2x128xf32>
    %cst_7 = arith.constant 1.000000e+00 : f32
    %10 = vector.broadcast %cst_7 : f32 to vector<2x128xf32>
    %11 = arith.addf %10, %9 : vector<2x128xf32>
    %12 = arith.divf %10, %11 : vector<2x128xf32>
    %13 = math.tanh %7 : vector<2x128xf32>
    %14 = vector.extract_strided_slice %12 {offsets = [0, 0], sizes = [2, 32], strides = [1, 1]} : vector<2x128xf32> to vector<2x32xf32>
    %15 = vector.extract_strided_slice %13 {offsets = [0, 64], sizes = [2, 32], strides = [1, 1]} : vector<2x128xf32> to vector<2x32xf32>
    %16 = vector.extract_strided_slice %12 {offsets = [0, 96], sizes = [2, 32], strides = [1, 1]} : vector<2x128xf32> to vector<2x32xf32>
    %17 = arith.mulf %14, %15 : vector<2x32xf32>
    %18 = math.tanh %17 : vector<2x32xf32>
    %19 = arith.mulf %16, %18 : vector<2x32xf32>
    %20 = vector.extract_strided_slice %5 {offsets = [2, 0], sizes = [2, 128], strides = [1, 1]} : vector<16x256xf32> to vector<2x128xf32>
    %cst_8 = arith.constant dense<0.000000e+00> : vector<2x128xf32>
    %21 = tpu.matmul %19, %6, %cst_8 {dimension_numbers = #tpu.dot_dimension_numbers<[1], [0], [0], [1], [0, 0, 1, 1], [], []>} : vector<2x32xf32>, vector<32x128xf32>, vector<2x128xf32> -> vector<2x128xf32>
    %22 = arith.addf %20, %21 : vector<2x128xf32>
    %23 = arith.negf %22 : vector<2x128xf32>
    %24 = math.exp %23 : vector<2x128xf32>
    %cst_9 = arith.constant 1.000000e+00 : f32
    %25 = vector.broadcast %cst_9 : f32 to vector<2x128xf32>
    %26 = arith.addf %25, %24 : vector<2x128xf32>
    %27 = arith.divf %25, %26 : vector<2x128xf32>
    %28 = math.tanh %22 : vector<2x128xf32>
    %29 = vector.extract_strided_slice %27 {offsets = [0, 0], sizes = [2, 32], strides = [1, 1]} : vector<2x128xf32> to vector<2x32xf32>
    %30 = vector.extract_strided_slice %27 {offsets = [0, 32], sizes = [2, 32], strides = [1, 1]} : vector<2x128xf32> to vector<2x32xf32>
    %31 = vector.extract_strided_slice %28 {offsets = [0, 64], sizes = [2, 32], strides = [1, 1]} : vector<2x128xf32> to vector<2x32xf32>
    %32 = vector.extract_strided_slice %27 {offsets = [0, 96], sizes = [2, 32], strides = [1, 1]} : vector<2x128xf32> to vector<2x32xf32>
    %33 = arith.mulf %30, %17 : vector<2x32xf32>
    %34 = arith.mulf %29, %31 : vector<2x32xf32>
    %35 = arith.addf %33, %34 : vector<2x32xf32>
    %36 = math.tanh %35 : vector<2x32xf32>
    %37 = arith.mulf %32, %36 : vector<2x32xf32>
    %38 = vector.extract_strided_slice %5 {offsets = [4, 0], sizes = [2, 128], strides = [1, 1]} : vector<16x256xf32> to vector<2x128xf32>
    %cst_10 = arith.constant dense<0.000000e+00> : vector<2x128xf32>
    %39 = tpu.matmul %37, %6, %cst_10 {dimension_numbers = #tpu.dot_dimension_numbers<[1], [0], [0], [1], [0, 0, 1, 1], [], []>} : vector<2x32xf32>, vector<32x128xf32>, vector<2x128xf32> -> vector<2x128xf32>
    %40 = arith.addf %38, %39 : vector<2x128xf32>
    %41 = arith.negf %40 : vector<2x128xf32>
    %42 = math.exp %41 : vector<2x128xf32>
    %cst_11 = arith.constant 1.000000e+00 : f32
    %43 = vector.broadcast %cst_11 : f32 to vector<2x128xf32>
    %44 = arith.addf %43, %42 : vector<2x128xf32>
    %45 = arith.divf %43, %44 : vector<2x128xf32>
    %46 = math.tanh %40 : vector<2x128xf32>
    %47 = vector.extract_strided_slice %45 {offsets = [0, 0], sizes = [2, 32], strides = [1, 1]} : vector<2x128xf32> to vector<2x32xf32>
    %48 = vector.extract_strided_slice %45 {offsets = [0, 32], sizes = [2, 32], strides = [1, 1]} : vector<2x128xf32> to vector<2x32xf32>
    %49 = vector.extract_strided_slice %46 {offsets = [0, 64], sizes = [2, 32], strides = [1, 1]} : vector<2x128xf32> to vector<2x32xf32>
    %50 = vector.extract_strided_slice %45 {offsets = [0, 96], sizes = [2, 32], strides = [1, 1]} : vector<2x128xf32> to vector<2x32xf32>
    %51 = arith.mulf %48, %35 : vector<2x32xf32>
    %52 = arith.mulf %47, %49 : vector<2x32xf32>
    %53 = arith.addf %51, %52 : vector<2x32xf32>
    %54 = math.tanh %53 : vector<2x32xf32>
    %55 = arith.mulf %50, %54 : vector<2x32xf32>
    %56 = vector.extract_strided_slice %5 {offsets = [6, 0], sizes = [2, 128], strides = [1, 1]} : vector<16x256xf32> to vector<2x128xf32>
    %cst_12 = arith.constant dense<0.000000e+00> : vector<2x128xf32>
    %57 = tpu.matmul %55, %6, %cst_12 {dimension_numbers = #tpu.dot_dimension_numbers<[1], [0], [0], [1], [0, 0, 1, 1], [], []>} : vector<2x32xf32>, vector<32x128xf32>, vector<2x128xf32> -> vector<2x128xf32>
    %58 = arith.addf %56, %57 : vector<2x128xf32>
    %59 = arith.negf %58 : vector<2x128xf32>
    %60 = math.exp %59 : vector<2x128xf32>
    %cst_13 = arith.constant 1.000000e+00 : f32
    %61 = vector.broadcast %cst_13 : f32 to vector<2x128xf32>
    %62 = arith.addf %61, %60 : vector<2x128xf32>
    %63 = arith.divf %61, %62 : vector<2x128xf32>
    %64 = math.tanh %58 : vector<2x128xf32>
    %65 = vector.extract_strided_slice %63 {offsets = [0, 0], sizes = [2, 32], strides = [1, 1]} : vector<2x128xf32> to vector<2x32xf32>
    %66 = vector.extract_strided_slice %63 {offsets = [0, 32], sizes = [2, 32], strides = [1, 1]} : vector<2x128xf32> to vector<2x32xf32>
    %67 = vector.extract_strided_slice %64 {offsets = [0, 64], sizes = [2, 32], strides = [1, 1]} : vector<2x128xf32> to vector<2x32xf32>
    %68 = vector.extract_strided_slice %63 {offsets = [0, 96], sizes = [2, 32], strides = [1, 1]} : vector<2x128xf32> to vector<2x32xf32>
    %69 = arith.mulf %66, %53 : vector<2x32xf32>
    %70 = arith.mulf %65, %67 : vector<2x32xf32>
    %71 = arith.addf %69, %70 : vector<2x32xf32>
    %72 = math.tanh %71 : vector<2x32xf32>
    %73 = arith.mulf %68, %72 : vector<2x32xf32>
    %74 = vector.extract_strided_slice %5 {offsets = [8, 0], sizes = [2, 128], strides = [1, 1]} : vector<16x256xf32> to vector<2x128xf32>
    %cst_14 = arith.constant dense<0.000000e+00> : vector<2x128xf32>
    %75 = tpu.matmul %73, %6, %cst_14 {dimension_numbers = #tpu.dot_dimension_numbers<[1], [0], [0], [1], [0, 0, 1, 1], [], []>} : vector<2x32xf32>, vector<32x128xf32>, vector<2x128xf32> -> vector<2x128xf32>
    %76 = arith.addf %74, %75 : vector<2x128xf32>
    %77 = arith.negf %76 : vector<2x128xf32>
    %78 = math.exp %77 : vector<2x128xf32>
    %cst_15 = arith.constant 1.000000e+00 : f32
    %79 = vector.broadcast %cst_15 : f32 to vector<2x128xf32>
    %80 = arith.addf %79, %78 : vector<2x128xf32>
    %81 = arith.divf %79, %80 : vector<2x128xf32>
    %82 = math.tanh %76 : vector<2x128xf32>
    %83 = vector.extract_strided_slice %81 {offsets = [0, 0], sizes = [2, 32], strides = [1, 1]} : vector<2x128xf32> to vector<2x32xf32>
    %84 = vector.extract_strided_slice %81 {offsets = [0, 32], sizes = [2, 32], strides = [1, 1]} : vector<2x128xf32> to vector<2x32xf32>
    %85 = vector.extract_strided_slice %82 {offsets = [0, 64], sizes = [2, 32], strides = [1, 1]} : vector<2x128xf32> to vector<2x32xf32>
    %86 = vector.extract_strided_slice %81 {offsets = [0, 96], sizes = [2, 32], strides = [1, 1]} : vector<2x128xf32> to vector<2x32xf32>
    %87 = arith.mulf %84, %71 : vector<2x32xf32>
    %88 = arith.mulf %83, %85 : vector<2x32xf32>
    %89 = arith.addf %87, %88 : vector<2x32xf32>
    %90 = math.tanh %89 : vector<2x32xf32>
    %91 = arith.mulf %86, %90 : vector<2x32xf32>
    %92 = vector.extract_strided_slice %5 {offsets = [10, 0], sizes = [2, 128], strides = [1, 1]} : vector<16x256xf32> to vector<2x128xf32>
    %cst_16 = arith.constant dense<0.000000e+00> : vector<2x128xf32>
    %93 = tpu.matmul %91, %6, %cst_16 {dimension_numbers = #tpu.dot_dimension_numbers<[1], [0], [0], [1], [0, 0, 1, 1], [], []>} : vector<2x32xf32>, vector<32x128xf32>, vector<2x128xf32> -> vector<2x128xf32>
    %94 = arith.addf %92, %93 : vector<2x128xf32>
    %95 = arith.negf %94 : vector<2x128xf32>
    %96 = math.exp %95 : vector<2x128xf32>
    %cst_17 = arith.constant 1.000000e+00 : f32
    %97 = vector.broadcast %cst_17 : f32 to vector<2x128xf32>
    %98 = arith.addf %97, %96 : vector<2x128xf32>
    %99 = arith.divf %97, %98 : vector<2x128xf32>
    %100 = math.tanh %94 : vector<2x128xf32>
    %101 = vector.extract_strided_slice %99 {offsets = [0, 0], sizes = [2, 32], strides = [1, 1]} : vector<2x128xf32> to vector<2x32xf32>
    %102 = vector.extract_strided_slice %99 {offsets = [0, 32], sizes = [2, 32], strides = [1, 1]} : vector<2x128xf32> to vector<2x32xf32>
    %103 = vector.extract_strided_slice %100 {offsets = [0, 64], sizes = [2, 32], strides = [1, 1]} : vector<2x128xf32> to vector<2x32xf32>
    %104 = vector.extract_strided_slice %99 {offsets = [0, 96], sizes = [2, 32], strides = [1, 1]} : vector<2x128xf32> to vector<2x32xf32>
    %105 = arith.mulf %102, %89 : vector<2x32xf32>
    %106 = arith.mulf %101, %103 : vector<2x32xf32>
    %107 = arith.addf %105, %106 : vector<2x32xf32>
    %108 = math.tanh %107 : vector<2x32xf32>
    %109 = arith.mulf %104, %108 : vector<2x32xf32>
    %110 = vector.extract_strided_slice %5 {offsets = [12, 0], sizes = [2, 128], strides = [1, 1]} : vector<16x256xf32> to vector<2x128xf32>
    %cst_18 = arith.constant dense<0.000000e+00> : vector<2x128xf32>
    %111 = tpu.matmul %109, %6, %cst_18 {dimension_numbers = #tpu.dot_dimension_numbers<[1], [0], [0], [1], [0, 0, 1, 1], [], []>} : vector<2x32xf32>, vector<32x128xf32>, vector<2x128xf32> -> vector<2x128xf32>
    %112 = arith.addf %110, %111 : vector<2x128xf32>
    %113 = arith.negf %112 : vector<2x128xf32>
    %114 = math.exp %113 : vector<2x128xf32>
    %cst_19 = arith.constant 1.000000e+00 : f32
    %115 = vector.broadcast %cst_19 : f32 to vector<2x128xf32>
    %116 = arith.addf %115, %114 : vector<2x128xf32>
    %117 = arith.divf %115, %116 : vector<2x128xf32>
    %118 = math.tanh %112 : vector<2x128xf32>
    %119 = vector.extract_strided_slice %117 {offsets = [0, 0], sizes = [2, 32], strides = [1, 1]} : vector<2x128xf32> to vector<2x32xf32>
    %120 = vector.extract_strided_slice %117 {offsets = [0, 32], sizes = [2, 32], strides = [1, 1]} : vector<2x128xf32> to vector<2x32xf32>
    %121 = vector.extract_strided_slice %118 {offsets = [0, 64], sizes = [2, 32], strides = [1, 1]} : vector<2x128xf32> to vector<2x32xf32>
    %122 = vector.extract_strided_slice %117 {offsets = [0, 96], sizes = [2, 32], strides = [1, 1]} : vector<2x128xf32> to vector<2x32xf32>
    %123 = arith.mulf %120, %107 : vector<2x32xf32>
    %124 = arith.mulf %119, %121 : vector<2x32xf32>
    %125 = arith.addf %123, %124 : vector<2x32xf32>
    %126 = math.tanh %125 : vector<2x32xf32>
    %127 = arith.mulf %122, %126 : vector<2x32xf32>
    %128 = vector.extract_strided_slice %5 {offsets = [14, 0], sizes = [2, 128], strides = [1, 1]} : vector<16x256xf32> to vector<2x128xf32>
    %cst_20 = arith.constant dense<0.000000e+00> : vector<2x128xf32>
    %129 = tpu.matmul %127, %6, %cst_20 {dimension_numbers = #tpu.dot_dimension_numbers<[1], [0], [0], [1], [0, 0, 1, 1], [], []>} : vector<2x32xf32>, vector<32x128xf32>, vector<2x128xf32> -> vector<2x128xf32>
    %130 = arith.addf %128, %129 : vector<2x128xf32>
    %131 = arith.negf %130 : vector<2x128xf32>
    %132 = math.exp %131 : vector<2x128xf32>
    %cst_21 = arith.constant 1.000000e+00 : f32
    %133 = vector.broadcast %cst_21 : f32 to vector<2x128xf32>
    %134 = arith.addf %133, %132 : vector<2x128xf32>
    %135 = arith.divf %133, %134 : vector<2x128xf32>
    %136 = math.tanh %130 : vector<2x128xf32>
    %137 = vector.extract_strided_slice %135 {offsets = [0, 0], sizes = [2, 32], strides = [1, 1]} : vector<2x128xf32> to vector<2x32xf32>
    %138 = vector.extract_strided_slice %135 {offsets = [0, 32], sizes = [2, 32], strides = [1, 1]} : vector<2x128xf32> to vector<2x32xf32>
    %139 = vector.extract_strided_slice %136 {offsets = [0, 64], sizes = [2, 32], strides = [1, 1]} : vector<2x128xf32> to vector<2x32xf32>
    %140 = vector.extract_strided_slice %135 {offsets = [0, 96], sizes = [2, 32], strides = [1, 1]} : vector<2x128xf32> to vector<2x32xf32>
    %141 = arith.mulf %138, %125 : vector<2x32xf32>
    %142 = arith.mulf %137, %139 : vector<2x32xf32>
    %143 = arith.addf %141, %142 : vector<2x32xf32>
    %144 = math.tanh %143 : vector<2x32xf32>
    %145 = arith.mulf %140, %144 : vector<2x32xf32>
    %146 = vector.extract_strided_slice %5 {offsets = [14, 128], sizes = [2, 128], strides = [1, 1]} : vector<16x256xf32> to vector<2x128xf32>
    %147 = arith.negf %146 : vector<2x128xf32>
    %148 = math.exp %147 : vector<2x128xf32>
    %cst_22 = arith.constant 1.000000e+00 : f32
    %149 = vector.broadcast %cst_22 : f32 to vector<2x128xf32>
    %150 = arith.addf %149, %148 : vector<2x128xf32>
    %151 = arith.divf %149, %150 : vector<2x128xf32>
    %152 = math.tanh %146 : vector<2x128xf32>
    %153 = vector.extract_strided_slice %151 {offsets = [0, 0], sizes = [2, 32], strides = [1, 1]} : vector<2x128xf32> to vector<2x32xf32>
    %154 = vector.extract_strided_slice %152 {offsets = [0, 64], sizes = [2, 32], strides = [1, 1]} : vector<2x128xf32> to vector<2x32xf32>
    %155 = vector.extract_strided_slice %151 {offsets = [0, 96], sizes = [2, 32], strides = [1, 1]} : vector<2x128xf32> to vector<2x32xf32>
    %156 = arith.mulf %153, %154 : vector<2x32xf32>
    %157 = math.tanh %156 : vector<2x32xf32>
    %158 = arith.mulf %155, %157 : vector<2x32xf32>
    %c0_23 = arith.constant 0 : index
    %c0_24 = arith.constant 0 : index
    %159 = vector.load %arg4[%c0_23, %c0_24] : memref<32x4xf32, #tpu.memory_space<vmem>>, vector<32x4xf32>
    %cst_25 = arith.constant dense<0.000000e+00> : vector<2x4xf32>
    %160 = tpu.matmul %145, %159, %cst_25 {dimension_numbers = #tpu.dot_dimension_numbers<[1], [0], [0], [1], [0, 0, 1, 1], [], []>} : vector<2x32xf32>, vector<32x4xf32>, vector<2x4xf32> -> vector<2x4xf32>
    %c0_26 = arith.constant 0 : index
    %c0_27 = arith.constant 0 : index
    %161 = vector.load %arg5[%c0_26, %c0_27] : memref<32x4xf32, #tpu.memory_space<vmem>>, vector<32x4xf32>
    %cst_28 = arith.constant dense<0.000000e+00> : vector<2x4xf32>
    %162 = tpu.matmul %158, %161, %cst_28 {dimension_numbers = #tpu.dot_dimension_numbers<[1], [0], [0], [1], [0, 0, 1, 1], [], []>} : vector<2x32xf32>, vector<32x4xf32>, vector<2x4xf32> -> vector<2x4xf32>
    %163 = arith.addf %160, %162 : vector<2x4xf32>
    %c0_29 = arith.constant 0 : index
    %c0_30 = arith.constant 0 : index
    %164 = vector.load %arg6[%c0_29, %c0_30] : memref<1x4xf32, #tpu.memory_space<vmem>>, vector<1x4xf32>
    %165 = vector.broadcast %164 : vector<1x4xf32> to vector<2x4xf32>
    %166 = arith.addf %163, %165 : vector<2x4xf32>
    %c0_31 = arith.constant 0 : index
    %c0_32 = arith.constant 0 : index
    %167 = vector.load %arg7[%c0_31, %c0_32] : memref<2x4xf32, #tpu.memory_space<vmem>>, vector<2x4xf32>
    tpu.vector_store %arg7[%c0_31, %c0_32], %166 {strides = array<i32>} : memref<2x4xf32, #tpu.memory_space<vmem>>, vector<2x4xf32>,
    return
  }
}

</mosaic_0001>

<llo_original>
// kernel: tpu_custom_call.1
$region0: #{tpu_custom_call.1}
  #allocation0 [shape = 'u32[]', space=smem, size = 0x4, offset = 0x4, fixed_abs, tag = 'smem constant byte address 0x4 - core index']
  #allocation1 [shape = 'u32[144,128]{1,0:T(1,128)}', space=vmem, size = 0x12000, scoped, tag = 'internal scratch']
  %s0 = inlined_call_operand.hbm [shape: f32[16,32], index: 0, kind: input, shape index: {}]
  %s1 = inlined_call_operand.vmem [shape: f32[32,256], index: 1, kind: input, shape index: {}]
  %s2 = inlined_call_operand.vmem [shape: f32[1,256], index: 2, kind: input, shape index: {}]
  %s3 = inlined_call_operand.hbm [shape: f32[32,128], index: 3, kind: input, shape index: {}]
  %s4 = inlined_call_operand.vmem [shape: f32[32,4], index: 4, kind: input, shape index: {}]
  %s5 = inlined_call_operand.vmem [shape: f32[32,4], index: 5, kind: input, shape index: {}]
  %s6 = inlined_call_operand.vmem [shape: f32[1,4], index: 6, kind: input, shape index: {}]
  %s7 = inlined_call_operand.hbm [shape: f32[2,4], index: 7, kind: output, shape index: {}]
  %s8 = sld [smem:[#allocation0]]
  $region46: #{tpu_custom_call.1} parent=0
    _
  %s10 = ssub.s32 1, %s8
  %s11 = scalar_select 0, %s10, %s8
  $region1: #{tpu_custom_call.1} parent=0
    #allocation2 [shape = 'u8[8192]{0}', space=vmem, size = 0x2000, scoped, tag = 'input window, operand 0, single buffered']
    #allocation3 [shape = 's32[1]{0}', space=sflag, size = 0x4, scoped, tag = 'scoped memory for tpu_custom_call.1']
    #allocation4 [shape = 's32[1]{0}', space=sflag, size = 0x4, scoped, tag = 'scoped memory for tpu_custom_call.1']
    #allocation5 [shape = 'u8[16384]{0}', space=vmem, size = 0x4000, scoped, tag = 'input window, operand 3, single buffered']
    #allocation6 [shape = 's32[1]{0}', space=sflag, size = 0x4, scoped, tag = 'scoped memory for tpu_custom_call.1']
    #allocation7 [shape = 'u8[1024]{0}', space=vmem, size = 0x400, scoped, tag = 'output window, operand 0, single buffered']
    %12 = vsyncpa [#allocation3], 0
    %13 = vsyncpa [#allocation6], 0
    %14 = vsyncpa [#allocation4], 0
    // Predicated region
    $region2: #{tpu_custom_call.1} parent=1 // pred_check
      _
    $region3: #{tpu_custom_call.1} parent=1 // pred_check_branch
      %16 = sbr.rel (0) target = $region5
    $region4: #{tpu_custom_call.1} parent=1 // pred_region
      %s18 = ssub.s32 256, 256
      %19 = vsyncadd [#allocation3], %s18
      %s20 = sshll.u32 [#allocation2], 4
      %s21 = int_to_ptr.vmem [resolvable:$true] %s20
      %26 = dma.hbm_to_vmem [thread:$0]  %s0, 256, %s21, [#allocation3], 128, 128, 8
    $region5: #{tpu_custom_call.1} parent=1 // pred_fallthru
      _
    // Predicated region
    $region6: #{tpu_custom_call.1} parent=1 // pred_check
      _
    $region7: #{tpu_custom_call.1} parent=1 // pred_check_branch
      %28 = sbr.rel (0) target = $region9
    $region8: #{tpu_custom_call.1} parent=1 // pred_region
      _
    $region9: #{tpu_custom_call.1} parent=1 // pred_fallthru
      _
    // Predicated region
    $region10: #{tpu_custom_call.1} parent=1 // pred_check
      _
    $region11: #{tpu_custom_call.1} parent=1 // pred_check_branch
      %30 = sbr.rel (0) target = $region13
    $region12: #{tpu_custom_call.1} parent=1 // pred_region
      _
    $region13: #{tpu_custom_call.1} parent=1 // pred_fallthru
      _
    // Predicated region
    $region14: #{tpu_custom_call.1} parent=1 // pred_check
      _
    $region15: #{tpu_custom_call.1} parent=1 // pred_check_branch
      %32 = sbr.rel (0) target = $region17
    $region16: #{tpu_custom_call.1} parent=1 // pred_region
      %s34 = ssub.s32 512, 512
      %35 = vsyncadd [#allocation6], %s34
      %s36 = sshll.u32 [#allocation5], 4
      %s37 = int_to_ptr.vmem [resolvable:$true] %s36
      %42 = dma.hbm_to_vmem [thread:$0]  %s3, 512, %s37, [#allocation6], 128, 128, 8
    $region17: #{tpu_custom_call.1} parent=1 // pred_fallthru
      _
    // Predicated region
    $region18: #{tpu_custom_call.1} parent=1 // pred_check
      _
    $region19: #{tpu_custom_call.1} parent=1 // pred_check_branch
      %44 = sbr.rel (0) target = $region21
    $region20: #{tpu_custom_call.1} parent=1 // pred_region
      _
    $region21: #{tpu_custom_call.1} parent=1 // pred_fallthru
      _
    // Predicated region
    $region22: #{tpu_custom_call.1} parent=1 // pred_check
      _
    $region23: #{tpu_custom_call.1} parent=1 // pred_check_branch
      %46 = sbr.rel (0) target = $region25
    $region24: #{tpu_custom_call.1} parent=1 // pred_region
      _
    $region25: #{tpu_custom_call.1} parent=1 // pred_fallthru
      _
    // Predicated region
    $region26: #{tpu_custom_call.1} parent=1 // pred_check
      _
    $region27: #{tpu_custom_call.1} parent=1 // pred_check_branch
      %48 = sbr.rel (0) target = $region29
    $region28: #{tpu_custom_call.1} parent=1 // pred_region
      _
    $region29: #{tpu_custom_call.1} parent=1 // pred_fallthru
      _
    // Predicated region
    $region30: #{tpu_custom_call.1} parent=1 // pred_check
      _
    $region31: #{tpu_custom_call.1} parent=1 // pred_check_branch
      %50 = sbr.rel (0) target = $region33
    $region32: #{tpu_custom_call.1} parent=1 // pred_region
      %51 = dma.done [#allocation3], 256
    $region33: #{tpu_custom_call.1} parent=1 // pred_fallthru
      _
    // Predicated region
    $region34: #{tpu_custom_call.1} parent=1 // pred_check
      _
    $region35: #{tpu_custom_call.1} parent=1 // pred_check_branch
      %53 = sbr.rel (0) target = $region37
    $region36: #{tpu_custom_call.1} parent=1 // pred_region
      %54 = dma.done [#allocation6], 512
    $region37: #{tpu_custom_call.1} parent=1 // pred_fallthru
      _
    %v55 = vld [vmem:[#allocation2] sm:$0xff]
    %v56 = vld [vmem:[#allocation2 + $0x8] sm:$0xff]
    %v57 = vld [vmem:[%s1] sm:$0xff]
    %v58 = vld [vmem:[%s1 + $0x8] sm:$0xff]
    %v59 = vld [vmem:[%s1 + $0x10] sm:$0xff]
    %v60 = vld [vmem:[%s1 + $0x18] sm:$0xff]
    %v61 = vld [vmem:[%s1 + $0x20] sm:$0xff]
    %v62 = vld [vmem:[%s1 + $0x28] sm:$0xff]
    %v63 = vld [vmem:[%s1 + $0x30] sm:$0xff]
    %v64 = vld [vmem:[%s1 + $0x38] sm:$0xff]
    %v65 = vld [vmem:[%s2] sm:$0x3]
    %v67 = vlaneseq
    %v68 = vshrl.u32 %v67, 7
    %v69 = vsub.s32 0, %v68
    %v70 = vrot.slane %v65, %v69
    %v71 = vlaneseq
    %v72 = vshrl.u32 %v71, 7
    %v73 = vsub.s32 1, %v72
    %v74 = vrot.slane %v65, %v73
    %vm77 = vcmask 261120
    %v79 = vsel %vm77, %v55, 0
    %v82 = vsel %vm77, %v56, 0
    %84 = vmatprep.subr.mxu0 %v58
    %85 = vmatpush1.msra.mxu0 %v57
    %86 = vmatprep.subr.mxu0 %v60
    %87 = vmatpush1.msra.mxu0 %v59
    %88 = vmatprep.subr.mxu0 %v62
    %89 = vmatpush1.msra.mxu0 %v61
    %90 = vmatprep.subr.mxu0 %v64
    %91 = vmatpush1.msra.mxu0 %v63
    %92 = vmatprep.subr.mxu0 0.0
    %93 = vmatpush1.msra.mxu0 0.0
    %94 = vmatprep.subr.mxu0 0.0
    %95 = vmatpush1.msra.mxu0 0.0
    %96 = vmatprep.subr.mxu0 0.0
    %97 = vmatpush1.msra.mxu0 0.0
    %98 = vmatprep.subr.mxu0 0.0
    %99 = vmatpush1.msra.mxu0 0.0
    %100 = vmatprep.subr.mxu0 0.0
    %101 = vmatpush1.msra.mxu0 0.0
    %102 = vmatprep.subr.mxu0 0.0
    %103 = vmatpush1.msra.mxu0 0.0
    %104 = vmatprep.subr.mxu0 0.0
    %105 = vmatpush1.msra.mxu0 0.0
    %106 = vmatprep.subr.mxu0 0.0
    %107 = vmatpush1.msra.mxu0 0.0
    %108 = vmatprep.subr.mxu0 0.0
    %109 = vmatpush1.msra.mxu0 0.0
    %110 = vmatprep.subr.mxu0 0.0
    %111 = vmatpush1.msra.mxu0 0.0
    %112 = vmatprep.subr.mxu0 0.0
    %113 = vmatpush1.msra.mxu0 0.0
    %114 = vmatprep.subr.mxu0 0.0
    %115 = vmatpush1.msra.mxu0 0.0
    %116 = vmatprep.subr.mxu0 0.0
    %117 = vmatpush1.msra.mxu0 0.0
    %118 = vmatprep.subr.mxu0 0.0
    %119 = vmatpush1.msra.mxu0 0.0
    %120 = vmatprep.subr.mxu0 0.0
    %121 = vmatpush1.msra.mxu0 0.0
    %122 = vmatprep.subr.mxu0 0.0
    %123 = vmatpush1.msra.mxu0 0.0
    %124 = vmatprep.subr.mxu0 0.0
    %125 = vmatpush1.msra.mxu0 0.0
    %126 = vmatprep.subr.mxu0 0.0
    %127 = vmatpush1.msra.mxu0 0.0
    %128 = vmatprep.subr.mxu0 0.0
    %129 = vmatpush1.msra.mxu0 0.0
    %130 = vmatprep.subr.mxu0 0.0
    %131 = vmatpush1.msra.mxu0 0.0
    %132 = vmatprep.subr.mxu0 0.0
    %133 = vmatpush1.msra.mxu0 0.0
    %134 = vmatprep.subr.mxu0 0.0
    %135 = vmatpush1.msra.mxu0 0.0
    %136 = vmatprep.subr.mxu0 0.0
    %137 = vmatpush1.msra.mxu0 0.0
    %138 = vmatprep.subr.mxu0 0.0
    %139 = vmatpush1.msra.mxu0 0.0
    %140 = vmatprep.subr.mxu0 0.0
    %141 = vmatpush1.msra.mxu0 0.0
    %142 = vmatprep.subr.mxu0 0.0
    %143 = vmatpush1.msra.mxu0 0.0
    %144 = vmatprep.subr.mxu0 0.0
    %145 = vmatpush1.msra.mxu0 0.0
    %146 = vmatprep.subr.mxu0 0.0
    %147 = vmatpush1.msra.mxu0 0.0
    %148 = vmatprep.mubr.f32.mxu0 0.0
    %149 = vmatmul.mubr.f32.gmra.mrb[0].mxu0 %v79
    %v150 = vpop.f32.mrb[0].mxu0
    %v151 = vadd.f32 %v70, %v150
    %v152 = vpop.f32.mrb[0].mxu0
    %153 = vmatprep.mubr.f32.mxu0 0.0
    %154 = vmatmul.mubr.f32.gmra.mrb[0].mxu0 %v82
    %v155 = vpop.f32.mrb[0].mxu0
    %v156 = vadd.f32 %v70, %v155
    %v157 = vpop.f32.mrb[0].mxu0
    %v158 = vadd.f32 %v74, %v157
    %159 = vdwg.mxu0
    %v160 = vld [vmem:[#allocation5] sm:$0xff]
    %v161 = vld [vmem:[#allocation5 + $0x8] sm:$0xff]
    %v162 = vld [vmem:[#allocation5 + $0x10] sm:$0xff]
    %v163 = vld [vmem:[#allocation5 + $0x18] sm:$0xff]
    %v164 = vxor.u32 %v151, 2147483648
    %v165 = vmul.f32 %v164, 1.442695
    %v166 = vpow.pop %v165
    %v167 = vadd.f32 %v166, 1.0
    %v168 = vrcp.pop %v167
    %v169 = vmul.f32 1.0, %v168
    %v170 = vtanh.pop %v151
    %172 = vrot.lane.b32.xlu0 %v170, 64
    %v173 = vpop.permute.xlu0 %172
    %v175 = vmul.f32 %v169, %v173
    %v176 = vtanh.pop %v175
    %178 = vrot.lane.b32.xlu0 %v176, 96
    %v179 = vpop.permute.xlu0 %178
    %v181 = vmul.f32 %v169, %v179
    %183 = vrot.lane.b32.xlu0 %v181, 32
    %v184 = vpop.permute.xlu0 %183
    %v185 = vsel %vm77, %v184, 0
    %187 = vmatprep.subr.mxu0 0.0
    %188 = vmatpush1.msra.mxu0 %v160
    %189 = vmatprep.subr.mxu0 0.0
    %190 = vmatpush1.msra.mxu0 %v161
    %191 = vmatprep.subr.mxu0 0.0
    %192 = vmatpush1.msra.mxu0 %v162
    %193 = vmatprep.subr.mxu0 0.0
    %194 = vmatpush1.msra.mxu0 %v163
    %195 = vmatprep.subr.mxu0 0.0
    %196 = vmatpush1.msra.mxu0 0.0
    %197 = vmatprep.subr.mxu0 0.0
    %198 = vmatpush1.msra.mxu0 0.0
    %199 = vmatprep.subr.mxu0 0.0
    %200 = vmatpush1.msra.mxu0 0.0
    %201 = vmatprep.subr.mxu0 0.0
    %202 = vmatpush1.msra.mxu0 0.0
    %203 = vmatprep.subr.mxu0 0.0
    %204 = vmatpush1.msra.mxu0 0.0
    %205 = vmatprep.subr.mxu0 0.0
    %206 = vmatpush1.msra.mxu0 0.0
    %207 = vmatprep.subr.mxu0 0.0
    %208 = vmatpush1.msra.mxu0 0.0
    %209 = vmatprep.subr.mxu0 0.0
    %210 = vmatpush1.msra.mxu0 0.0
    %211 = vmatprep.subr.mxu0 0.0
    %212 = vmatpush1.msra.mxu0 0.0
    %213 = vmatprep.subr.mxu0 0.0
    %214 = vmatpush1.msra.mxu0 0.0
    %215 = vmatprep.subr.mxu0 0.0
    %216 = vmatpush1.msra.mxu0 0.0
    %217 = vmatprep.subr.mxu0 0.0
    %218 = vmatpush1.msra.mxu0 0.0
    %219 = vmatprep.subr.mxu0 0.0
    %220 = vmatpush1.msra.mxu0 0.0
    %221 = vmatprep.subr.mxu0 0.0
    %222 = vmatpush1.msra.mxu0 0.0
    %223 = vmatprep.subr.mxu0 0.0
    %224 = vmatpush1.msra.mxu0 0.0
    %225 = vmatprep.subr.mxu0 0.0
    %226 = vmatpush1.msra.mxu0 0.0
    %227 = vmatprep.subr.mxu0 0.0
    %228 = vmatpush1.msra.mxu0 0.0
    %229 = vmatprep.subr.mxu0 0.0
    %230 = vmatpush1.msra.mxu0 0.0
    %231 = vmatprep.subr.mxu0 0.0
    %232 = vmatpush1.msra.mxu0 0.0
    %233 = vmatprep.subr.mxu0 0.0
    %234 = vmatpush1.msra.mxu0 0.0
    %235 = vmatprep.subr.mxu0 0.0
    %236 = vmatpush1.msra.mxu0 0.0
    %237 = vmatprep.subr.mxu0 0.0
    %238 = vmatpush1.msra.mxu0 0.0
    %239 = vmatprep.subr.mxu0 0.0
    %240 = vmatpush1.msra.mxu0 0.0
    %241 = vmatprep.subr.mxu0 0.0
    %242 = vmatpush1.msra.mxu0 0.0
    %243 = vmatprep.subr.mxu0 0.0
    %244 = vmatpush1.msra.mxu0 0.0
    %245 = vmatprep.subr.mxu0 0.0
    %246 = vmatpush1.msra.mxu0 0.0
    %247 = vmatprep.subr.mxu0 0.0
    %248 = vmatpush1.msra.mxu0 0.0
    %249 = vmatprep.subr.mxu0 0.0
    %250 = vmatpush1.msra.mxu0 0.0
    %251 = vmatprep.mubr.f32.mxu0 0.0
    %252 = vmatmul.mubr.f32.gmra.mrb[0].mxu0 %v185
    %v253 = vpop.f32.mrb[0].mxu0
    %v254 = vadd.f32 0.0, %v253
    %v255 = vpop.f32.mrb[0].mxu0
    %256 = vdwg.mxu0
    %v258 = vrot.slane %v254, 6
    %v260 = vadd.f32 %v151, %v258
    %v261 = vxor.u32 %v260, 2147483648
    %v262 = vmul.f32 %v261, 1.442695
    %v263 = vpow.pop %v262
    %v264 = vadd.f32 %v263, 1.0
    %v265 = vrcp.pop %v264
    %v266 = vmul.f32 1.0, %v265
    %v267 = vtanh.pop %v260
    %v269 = vrot.slane %v175, 6
    %270 = vrot.lane.b32.xlu0 %v269, 32
    %v271 = vpop.permute.xlu0 %270
    %v273 = vmul.f32 %v266, %v271
    %275 = vrot.lane.b32.xlu0 %v267, 64
    %v276 = vpop.permute.xlu0 %275
    %v278 = vmul.f32 %v266, %v276
    %280 = vrot.lane.b32.xlu0 %v278, 32
    %v281 = vpop.permute.xlu0 %280
    %v283 = vadd.f32 %v273, %v281
    %v284 = vtanh.pop %v283
    %286 = vrot.lane.b32.xlu0 %v284, 64
    %v287 = vpop.permute.xlu0 %286
    %v289 = vmul.f32 %v266, %v287
    %v291 = vrot.slane %v289, 2
    %292 = vrot.lane.b32.xlu0 %v291, 32
    %v293 = vpop.permute.xlu0 %292
    %v294 = vsel %vm77, %v293, 0
    %296 = vmatprep.subr.mxu0 0.0
    %297 = vmatpush1.msra.mxu0 %v160
    %298 = vmatprep.subr.mxu0 0.0
    %299 = vmatpush1.msra.mxu0 %v161
    %300 = vmatprep.subr.mxu0 0.0
    %301 = vmatpush1.msra.mxu0 %v162
    %302 = vmatprep.subr.mxu0 0.0
    %303 = vmatpush1.msra.mxu0 %v163
    %304 = vmatprep.subr.mxu0 0.0
    %305 = vmatpush1.msra.mxu0 0.0
    %306 = vmatprep.subr.mxu0 0.0
    %307 = vmatpush1.msra.mxu0 0.0
    %308 = vmatprep.subr.mxu0 0.0
    %309 = vmatpush1.msra.mxu0 0.0
    %310 = vmatprep.subr.mxu0 0.0
    %311 = vmatpush1.msra.mxu0 0.0
    %312 = vmatprep.subr.mxu0 0.0
    %313 = vmatpush1.msra.mxu0 0.0
    %314 = vmatprep.subr.mxu0 0.0
    %315 = vmatpush1.msra.mxu0 0.0
    %316 = vmatprep.subr.mxu0 0.0
    %317 = vmatpush1.msra.mxu0 0.0
    %318 = vmatprep.subr.mxu0 0.0
    %319 = vmatpush1.msra.mxu0 0.0
    %320 = vmatprep.subr.mxu0 0.0
    %321 = vmatpush1.msra.mxu0 0.0
    %322 = vmatprep.subr.mxu0 0.0
    %323 = vmatpush1.msra.mxu0 0.0
    %324 = vmatprep.subr.mxu0 0.0
    %325 = vmatpush1.msra.mxu0 0.0
    %326 = vmatprep.subr.mxu0 0.0
    %327 = vmatpush1.msra.mxu0 0.0
    %328 = vmatprep.subr.mxu0 0.0
    %329 = vmatpush1.msra.mxu0 0.0
    %330 = vmatprep.subr.mxu0 0.0
    %331 = vmatpush1.msra.mxu0 0.0
    %332 = vmatprep.subr.mxu0 0.0
    %333 = vmatpush1.msra.mxu0 0.0
    %334 = vmatprep.subr.mxu0 0.0
    %335 = vmatpush1.msra.mxu0 0.0
    %336 = vmatprep.subr.mxu0 0.0
    %337 = vmatpush1.msra.mxu0 0.0
    %338 = vmatprep.subr.mxu0 0.0
    %339 = vmatpush1.msra.mxu0 0.0
    %340 = vmatprep.subr.mxu0 0.0
    %341 = vmatpush1.msra.mxu0 0.0
    %342 = vmatprep.subr.mxu0 0.0
    %343 = vmatpush1.msra.mxu0 0.0
    %344 = vmatprep.subr.mxu0 0.0
    %345 = vmatpush1.msra.mxu0 0.0
    %346 = vmatprep.subr.mxu0 0.0
    %347 = vmatpush1.msra.mxu0 0.0
    %348 = vmatprep.subr.mxu0 0.0
    %349 = vmatpush1.msra.mxu0 0.0
    %350 = vmatprep.subr.mxu0 0.0
    %351 = vmatpush1.msra.mxu0 0.0
    %352 = vmatprep.subr.mxu0 0.0
    %353 = vmatpush1.msra.mxu0 0.0
    %354 = vmatprep.subr.mxu0 0.0
    %355 = vmatpush1.msra.mxu0 0.0
    %356 = vmatprep.subr.mxu0 0.0
    %357 = vmatpush1.msra.mxu0 0.0
    %358 = vmatprep.subr.mxu0 0.0
    %359 = vmatpush1.msra.mxu0 0.0
    %360 = vmatprep.mubr.f32.mxu0 0.0
    %361 = vmatmul.mubr.f32.gmra.mrb[0].mxu0 %v294
    %v362 = vpop.f32.mrb[0].mxu0
    %v363 = vadd.f32 0.0, %v362
    %v364 = vpop.f32.mrb[0].mxu0
    %365 = vdwg.mxu0
    %v367 = vrot.slane %v363, 4
    %v369 = vadd.f32 %v151, %v367
    %v370 = vxor.u32 %v369, 2147483648
    %v371 = vmul.f32 %v370, 1.442695
    %v372 = vpow.pop %v371
    %v373 = vadd.f32 %v372, 1.0
    %v374 = vrcp.pop %v373
    %v375 = vmul.f32 1.0, %v374
    %v376 = vtanh.pop %v369
    %v378 = vrot.slane %v283, 6
    %v380 = vmul.f32 %v375, %v378
    %382 = vrot.lane.b32.xlu0 %v376, 64
    %v383 = vpop.permute.xlu0 %382
    %v385 = vmul.f32 %v375, %v383
    %387 = vrot.lane.b32.xlu0 %v385, 32
    %v388 = vpop.permute.xlu0 %387
    %v390 = vadd.f32 %v380, %v388
    %v391 = vtanh.pop %v390
    %393 = vrot.lane.b32.xlu0 %v391, 64
    %v394 = vpop.permute.xlu0 %393
    %v396 = vmul.f32 %v375, %v394
    %v398 = vrot.slane %v396, 4
    %399 = vrot.lane.b32.xlu0 %v398, 32
    %v400 = vpop.permute.xlu0 %399
    %v401 = vsel %vm77, %v400, 0
    %403 = vmatprep.subr.mxu0 0.0
    %404 = vmatpush1.msra.mxu0 %v160
    %405 = vmatprep.subr.mxu0 0.0
    %406 = vmatpush1.msra.mxu0 %v161
    %407 = vmatprep.subr.mxu0 0.0
    %408 = vmatpush1.msra.mxu0 %v162
    %409 = vmatprep.subr.mxu0 0.0
    %410 = vmatpush1.msra.mxu0 %v163
    %411 = vmatprep.subr.mxu0 0.0
    %412 = vmatpush1.msra.mxu0 0.0
    %413 = vmatprep.subr.mxu0 0.0
    %414 = vmatpush1.msra.mxu0 0.0
    %415 = vmatprep.subr.mxu0 0.0
    %416 = vmatpush1.msra.mxu0 0.0
    %417 = vmatprep.subr.mxu0 0.0
    %418 = vmatpush1.msra.mxu0 0.0
    %419 = vmatprep.subr.mxu0 0.0
    %420 = vmatpush1.msra.mxu0 0.0
    %421 = vmatprep.subr.mxu0 0.0
    %422 = vmatpush1.msra.mxu0 0.0
    %423 = vmatprep.subr.mxu0 0.0
    %424 = vmatpush1.msra.mxu0 0.0
    %425 = vmatprep.subr.mxu0 0.0
    %426 = vmatpush1.msra.mxu0 0.0
    %427 = vmatprep.subr.mxu0 0.0
    %428 = vmatpush1.msra.mxu0 0.0
    %429 = vmatprep.subr.mxu0 0.0
    %430 = vmatpush1.msra.mxu0 0.0
    %431 = vmatprep.subr.mxu0 0.0
    %432 = vmatpush1.msra.mxu0 0.0
    %433 = vmatprep.subr.mxu0 0.0
    %434 = vmatpush1.msra.mxu0 0.0
    %435 = vmatprep.subr.mxu0 0.0
    %436 = vmatpush1.msra.mxu0 0.0
    %437 = vmatprep.subr.mxu0 0.0
    %438 = vmatpush1.msra.mxu0 0.0
    %439 = vmatprep.subr.mxu0 0.0
    %440 = vmatpush1.msra.mxu0 0.0
    %441 = vmatprep.subr.mxu0 0.0
    %442 = vmatpush1.msra.mxu0 0.0
    %443 = vmatprep.subr.mxu0 0.0
    %444 = vmatpush1.msra.mxu0 0.0
    %445 = vmatprep.subr.mxu0 0.0
    %446 = vmatpush1.msra.mxu0 0.0
    %447 = vmatprep.subr.mxu0 0.0
    %448 = vmatpush1.msra.mxu0 0.0
    %449 = vmatprep.subr.mxu0 0.0
    %450 = vmatpush1.msra.mxu0 0.0
    %451 = vmatprep.subr.mxu0 0.0
    %452 = vmatpush1.msra.mxu0 0.0
    %453 = vmatprep.subr.mxu0 0.0
    %454 = vmatpush1.msra.mxu0 0.0
    %455 = vmatprep.subr.mxu0 0.0
    %456 = vmatpush1.msra.mxu0 0.0
    %457 = vmatprep.subr.mxu0 0.0
    %458 = vmatpush1.msra.mxu0 0.0
    %459 = vmatprep.subr.mxu0 0.0
    %460 = vmatpush1.msra.mxu0 0.0
    %461 = vmatprep.subr.mxu0 0.0
    %462 = vmatpush1.msra.mxu0 0.0
    %463 = vmatprep.subr.mxu0 0.0
    %464 = vmatpush1.msra.mxu0 0.0
    %465 = vmatprep.subr.mxu0 0.0
    %466 = vmatpush1.msra.mxu0 0.0
    %467 = vmatprep.mubr.f32.mxu0 0.0
    %468 = vmatmul.mubr.f32.gmra.mrb[0].mxu0 %v401
    %v469 = vpop.f32.mrb[0].mxu0
    %v470 = vadd.f32 0.0, %v469
    %v471 = vpop.f32.mrb[0].mxu0
    %472 = vdwg.mxu0
    %v474 = vrot.slane %v470, 2
    %v476 = vadd.f32 %v151, %v474
    %v477 = vxor.u32 %v476, 2147483648
    %v478 = vmul.f32 %v477, 1.442695
    %v479 = vpow.pop %v478
    %v480 = vadd.f32 %v479, 1.0
    %v481 = vrcp.pop %v480
    %v482 = vmul.f32 1.0, %v481
    %v483 = vtanh.pop %v476
    %v485 = vrot.slane %v390, 6
    %v487 = vmul.f32 %v482, %v485
    %489 = vrot.lane.b32.xlu0 %v483, 64
    %v490 = vpop.permute.xlu0 %489
    %v492 = vmul.f32 %v482, %v490
    %494 = vrot.lane.b32.xlu0 %v492, 32
    %v495 = vpop.permute.xlu0 %494
    %v497 = vadd.f32 %v487, %v495
    %v498 = vtanh.pop %v497
    %500 = vrot.lane.b32.xlu0 %v498, 64
    %v501 = vpop.permute.xlu0 %500
    %v503 = vmul.f32 %v482, %v501
    %v505 = vrot.slane %v503, 6
    %506 = vrot.lane.b32.xlu0 %v505, 32
    %v507 = vpop.permute.xlu0 %506
    %v508 = vsel %vm77, %v507, 0
    %510 = vmatprep.subr.mxu0 0.0
    %511 = vmatpush1.msra.mxu0 %v160
    %512 = vmatprep.subr.mxu0 0.0
    %513 = vmatpush1.msra.mxu0 %v161
    %514 = vmatprep.subr.mxu0 0.0
    %515 = vmatpush1.msra.mxu0 %v162
    %516 = vmatprep.subr.mxu0 0.0
    %517 = vmatpush1.msra.mxu0 %v163
    %518 = vmatprep.subr.mxu0 0.0
    %519 = vmatpush1.msra.mxu0 0.0
    %520 = vmatprep.subr.mxu0 0.0
    %521 = vmatpush1.msra.mxu0 0.0
    %522 = vmatprep.subr.mxu0 0.0
    %523 = vmatpush1.msra.mxu0 0.0
    %524 = vmatprep.subr.mxu0 0.0
    %525 = vmatpush1.msra.mxu0 0.0
    %526 = vmatprep.subr.mxu0 0.0
    %527 = vmatpush1.msra.mxu0 0.0
    %528 = vmatprep.subr.mxu0 0.0
    %529 = vmatpush1.msra.mxu0 0.0
    %530 = vmatprep.subr.mxu0 0.0
    %531 = vmatpush1.msra.mxu0 0.0
    %532 = vmatprep.subr.mxu0 0.0
    %533 = vmatpush1.msra.mxu0 0.0
    %534 = vmatprep.subr.mxu0 0.0
    %535 = vmatpush1.msra.mxu0 0.0
    %536 = vmatprep.subr.mxu0 0.0
    %537 = vmatpush1.msra.mxu0 0.0
    %538 = vmatprep.subr.mxu0 0.0
    %539 = vmatpush1.msra.mxu0 0.0
    %540 = vmatprep.subr.mxu0 0.0
    %541 = vmatpush1.msra.mxu0 0.0
    %542 = vmatprep.subr.mxu0 0.0
    %543 = vmatpush1.msra.mxu0 0.0
    %544 = vmatprep.subr.mxu0 0.0
    %545 = vmatpush1.msra.mxu0 0.0
    %546 = vmatprep.subr.mxu0 0.0
    %547 = vmatpush1.msra.mxu0 0.0
    %548 = vmatprep.subr.mxu0 0.0
    %549 = vmatpush1.msra.mxu0 0.0
    %550 = vmatprep.subr.mxu0 0.0
    %551 = vmatpush1.msra.mxu0 0.0
    %552 = vmatprep.subr.mxu0 0.0
    %553 = vmatpush1.msra.mxu0 0.0
    %554 = vmatprep.subr.mxu0 0.0
    %555 = vmatpush1.msra.mxu0 0.0
    %556 = vmatprep.subr.mxu0 0.0
    %557 = vmatpush1.msra.mxu0 0.0
    %558 = vmatprep.subr.mxu0 0.0
    %559 = vmatpush1.msra.mxu0 0.0
    %560 = vmatprep.subr.mxu0 0.0
    %561 = vmatpush1.msra.mxu0 0.0
    %562 = vmatprep.subr.mxu0 0.0
    %563 = vmatpush1.msra.mxu0 0.0
    %564 = vmatprep.subr.mxu0 0.0
    %565 = vmatpush1.msra.mxu0 0.0
    %566 = vmatprep.subr.mxu0 0.0
    %567 = vmatpush1.msra.mxu0 0.0
    %568 = vmatprep.subr.mxu0 0.0
    %569 = vmatpush1.msra.mxu0 0.0
    %570 = vmatprep.subr.mxu0 0.0
    %571 = vmatpush1.msra.mxu0 0.0
    %572 = vmatprep.subr.mxu0 0.0
    %573 = vmatpush1.msra.mxu0 0.0
    %574 = vmatprep.mubr.f32.mxu0 0.0
    %575 = vmatmul.mubr.f32.gmra.mrb[0].mxu0 %v508
    %v576 = vpop.f32.mrb[0].mxu0
    %v577 = vadd.f32 0.0, %v576
    %v578 = vpop.f32.mrb[0].mxu0
    %579 = vdwg.mxu0
    %v580 = vadd.f32 %v156, %v577
    %v581 = vxor.u32 %v580, 2147483648
    %v582 = vmul.f32 %v581, 1.442695
    %v583 = vpow.pop %v582
    %v584 = vadd.f32 %v583, 1.0
    %v585 = vrcp.pop %v584
    %v586 = vmul.f32 1.0, %v585
    %v587 = vtanh.pop %v580
    %v589 = vrot.slane %v497, 6
    %v591 = vmul.f32 %v586, %v589
    %593 = vrot.lane.b32.xlu0 %v587, 64
    %v594 = vpop.permute.xlu0 %593
    %v596 = vmul.f32 %v586, %v594
    %598 = vrot.lane.b32.xlu0 %v596, 32
    %v599 = vpop.permute.xlu0 %598
    %v601 = vadd.f32 %v591, %v599
    %v602 = vtanh.pop %v601
    %604 = vrot.lane.b32.xlu0 %v602, 64
    %v605 = vpop.permute.xlu0 %604
    %v607 = vmul.f32 %v586, %v605
    %609 = vrot.lane.b32.xlu0 %v607, 32
    %v610 = vpop.permute.xlu0 %609
    %v611 = vsel %vm77, %v610, 0
    %613 = vmatprep.subr.mxu0 0.0
    %614 = vmatpush1.msra.mxu0 %v160
    %615 = vmatprep.subr.mxu0 0.0
    %616 = vmatpush1.msra.mxu0 %v161
    %617 = vmatprep.subr.mxu0 0.0
    %618 = vmatpush1.msra.mxu0 %v162
    %619 = vmatprep.subr.mxu0 0.0
    %620 = vmatpush1.msra.mxu0 %v163
    %621 = vmatprep.subr.mxu0 0.0
    %622 = vmatpush1.msra.mxu0 0.0
    %623 = vmatprep.subr.mxu0 0.0
    %624 = vmatpush1.msra.mxu0 0.0
    %625 = vmatprep.subr.mxu0 0.0
    %626 = vmatpush1.msra.mxu0 0.0
    %627 = vmatprep.subr.mxu0 0.0
    %628 = vmatpush1.msra.mxu0 0.0
    %629 = vmatprep.subr.mxu0 0.0
    %630 = vmatpush1.msra.mxu0 0.0
    %631 = vmatprep.subr.mxu0 0.0
    %632 = vmatpush1.msra.mxu0 0.0
    %633 = vmatprep.subr.mxu0 0.0
    %634 = vmatpush1.msra.mxu0 0.0
    %635 = vmatprep.subr.mxu0 0.0
    %636 = vmatpush1.msra.mxu0 0.0
    %637 = vmatprep.subr.mxu0 0.0
    %638 = vmatpush1.msra.mxu0 0.0
    %639 = vmatprep.subr.mxu0 0.0
    %640 = vmatpush1.msra.mxu0 0.0
    %641 = vmatprep.subr.mxu0 0.0
    %642 = vmatpush1.msra.mxu0 0.0
    %643 = vmatprep.subr.mxu0 0.0
    %644 = vmatpush1.msra.mxu0 0.0
    %645 = vmatprep.subr.mxu0 0.0
    %646 = vmatpush1.msra.mxu0 0.0
    %647 = vmatprep.subr.mxu0 0.0
    %648 = vmatpush1.msra.mxu0 0.0
    %649 = vmatprep.subr.mxu0 0.0
    %650 = vmatpush1.msra.mxu0 0.0
    %651 = vmatprep.subr.mxu0 0.0
    %652 = vmatpush1.msra.mxu0 0.0
    %653 = vmatprep.subr.mxu0 0.0
    %654 = vmatpush1.msra.mxu0 0.0
    %655 = vmatprep.subr.mxu0 0.0
    %656 = vmatpush1.msra.mxu0 0.0
    %657 = vmatprep.subr.mxu0 0.0
    %658 = vmatpush1.msra.mxu0 0.0
    %659 = vmatprep.subr.mxu0 0.0
    %660 = vmatpush1.msra.mxu0 0.0
    %661 = vmatprep.subr.mxu0 0.0
    %662 = vmatpush1.msra.mxu0 0.0
    %663 = vmatprep.subr.mxu0 0.0
    %664 = vmatpush1.msra.mxu0 0.0
    %665 = vmatprep.subr.mxu0 0.0
    %666 = vmatpush1.msra.mxu0 0.0
    %667 = vmatprep.subr.mxu0 0.0
    %668 = vmatpush1.msra.mxu0 0.0
    %669 = vmatprep.subr.mxu0 0.0
    %670 = vmatpush1.msra.mxu0 0.0
    %671 = vmatprep.subr.mxu0 0.0
    %672 = vmatpush1.msra.mxu0 0.0
    %673 = vmatprep.subr.mxu0 0.0
    %674 = vmatpush1.msra.mxu0 0.0
    %675 = vmatprep.subr.mxu0 0.0
    %676 = vmatpush1.msra.mxu0 0.0
    %677 = vmatprep.mubr.f32.mxu0 0.0
    %678 = vmatmul.mubr.f32.gmra.mrb[0].mxu0 %v611
    %v679 = vpop.f32.mrb[0].mxu0
    %v680 = vadd.f32 0.0, %v679
    %v681 = vpop.f32.mrb[0].mxu0
    %682 = vdwg.mxu0
    %v684 = vrot.slane %v680, 6
    %v686 = vadd.f32 %v156, %v684
    %v687 = vxor.u32 %v686, 2147483648
    %v688 = vmul.f32 %v687, 1.442695
    %v689 = vpow.pop %v688
    %v690 = vadd.f32 %v689, 1.0
    %v691 = vrcp.pop %v690
    %v692 = vmul.f32 1.0, %v691
    %v693 = vtanh.pop %v686
    %v695 = vrot.slane %v601, 6
    %v697 = vmul.f32 %v692, %v695
    %699 = vrot.lane.b32.xlu0 %v693, 64
    %v700 = vpop.permute.xlu0 %699
    %v702 = vmul.f32 %v692, %v700
    %704 = vrot.lane.b32.xlu0 %v702, 32
    %v705 = vpop.permute.xlu0 %704
    %v707 = vadd.f32 %v697, %v705
    %v708 = vtanh.pop %v707
    %710 = vrot.lane.b32.xlu0 %v708, 64
    %v711 = vpop.permute.xlu0 %710
    %v713 = vmul.f32 %v692, %v711
    %v715 = vrot.slane %v713, 2
    %716 = vrot.lane.b32.xlu0 %v715, 32
    %v717 = vpop.permute.xlu0 %716
    %v718 = vsel %vm77, %v717, 0
    %720 = vmatprep.subr.mxu0 0.0
    %721 = vmatpush1.msra.mxu0 %v160
    %722 = vmatprep.subr.mxu0 0.0
    %723 = vmatpush1.msra.mxu0 %v161
    %724 = vmatprep.subr.mxu0 0.0
    %725 = vmatpush1.msra.mxu0 %v162
    %726 = vmatprep.subr.mxu0 0.0
    %727 = vmatpush1.msra.mxu0 %v163
    %728 = vmatprep.subr.mxu0 0.0
    %729 = vmatpush1.msra.mxu0 0.0
    %730 = vmatprep.subr.mxu0 0.0
    %731 = vmatpush1.msra.mxu0 0.0
    %732 = vmatprep.subr.mxu0 0.0
    %733 = vmatpush1.msra.mxu0 0.0
    %734 = vmatprep.subr.mxu0 0.0
    %735 = vmatpush1.msra.mxu0 0.0
    %736 = vmatprep.subr.mxu0 0.0
    %737 = vmatpush1.msra.mxu0 0.0
    %738 = vmatprep.subr.mxu0 0.0
    %739 = vmatpush1.msra.mxu0 0.0
    %740 = vmatprep.subr.mxu0 0.0
    %741 = vmatpush1.msra.mxu0 0.0
    %742 = vmatprep.subr.mxu0 0.0
    %743 = vmatpush1.msra.mxu0 0.0
    %744 = vmatprep.subr.mxu0 0.0
    %745 = vmatpush1.msra.mxu0 0.0
    %746 = vmatprep.subr.mxu0 0.0
    %747 = vmatpush1.msra.mxu0 0.0
    %748 = vmatprep.subr.mxu0 0.0
    %749 = vmatpush1.msra.mxu0 0.0
    %750 = vmatprep.subr.mxu0 0.0
    %751 = vmatpush1.msra.mxu0 0.0
    %752 = vmatprep.subr.mxu0 0.0
    %753 = vmatpush1.msra.mxu0 0.0
    %754 = vmatprep.subr.mxu0 0.0
    %755 = vmatpush1.msra.mxu0 0.0
    %756 = vmatprep.subr.mxu0 0.0
    %757 = vmatpush1.msra.mxu0 0.0
    %758 = vmatprep.subr.mxu0 0.0
    %759 = vmatpush1.msra.mxu0 0.0
    %760 = vmatprep.subr.mxu0 0.0
    %761 = vmatpush1.msra.mxu0 0.0
    %762 = vmatprep.subr.mxu0 0.0
    %763 = vmatpush1.msra.mxu0 0.0
    %764 = vmatprep.subr.mxu0 0.0
    %765 = vmatpush1.msra.mxu0 0.0
    %766 = vmatprep.subr.mxu0 0.0
    %767 = vmatpush1.msra.mxu0 0.0
    %768 = vmatprep.subr.mxu0 0.0
    %769 = vmatpush1.msra.mxu0 0.0
    %770 = vmatprep.subr.mxu0 0.0
    %771 = vmatpush1.msra.mxu0 0.0
    %772 = vmatprep.subr.mxu0 0.0
    %773 = vmatpush1.msra.mxu0 0.0
    %774 = vmatprep.subr.mxu0 0.0
    %775 = vmatpush1.msra.mxu0 0.0
    %776 = vmatprep.subr.mxu0 0.0
    %777 = vmatpush1.msra.mxu0 0.0
    %778 = vmatprep.subr.mxu0 0.0
    %779 = vmatpush1.msra.mxu0 0.0
    %780 = vmatprep.subr.mxu0 0.0
    %781 = vmatpush1.msra.mxu0 0.0
    %782 = vmatprep.subr.mxu0 0.0
    %783 = vmatpush1.msra.mxu0 0.0
    %784 = vmatprep.mubr.f32.mxu0 0.0
    %785 = vmatmul.mubr.f32.gmra.mrb[0].mxu0 %v718
    %v786 = vpop.f32.mrb[0].mxu0
    %v787 = vadd.f32 0.0, %v786
    %v788 = vpop.f32.mrb[0].mxu0
    %789 = vdwg.mxu0
    %v791 = vrot.slane %v787, 4
    %v793 = vadd.f32 %v156, %v791
    %v794 = vxor.u32 %v793, 2147483648
    %v795 = vmul.f32 %v794, 1.442695
    %v796 = vpow.pop %v795
    %v797 = vadd.f32 %v796, 1.0
    %v798 = vrcp.pop %v797
    %v799 = vmul.f32 1.0, %v798
    %v800 = vtanh.pop %v793
    %v802 = vrot.slane %v707, 6
    %v804 = vmul.f32 %v799, %v802
    %806 = vrot.lane.b32.xlu0 %v800, 64
    %v807 = vpop.permute.xlu0 %806
    %v809 = vmul.f32 %v799, %v807
    %811 = vrot.lane.b32.xlu0 %v809, 32
    %v812 = vpop.permute.xlu0 %811
    %v814 = vadd.f32 %v804, %v812
    %v815 = vtanh.pop %v814
    %817 = vrot.lane.b32.xlu0 %v815, 64
    %v818 = vpop.permute.xlu0 %817
    %v820 = vmul.f32 %v799, %v818
    %v822 = vrot.slane %v820, 4
    %823 = vrot.lane.b32.xlu0 %v822, 32
    %v824 = vpop.permute.xlu0 %823
    %v825 = vsel %vm77, %v824, 0
    %827 = vmatprep.subr.mxu0 0.0
    %828 = vmatpush1.msra.mxu0 %v160
    %829 = vmatprep.subr.mxu0 0.0
    %830 = vmatpush1.msra.mxu0 %v161
    %831 = vmatprep.subr.mxu0 0.0
    %832 = vmatpush1.msra.mxu0 %v162
    %833 = vmatprep.subr.mxu0 0.0
    %834 = vmatpush1.msra.mxu0 %v163
    %835 = vmatprep.subr.mxu0 0.0
    %836 = vmatpush1.msra.mxu0 0.0
    %837 = vmatprep.subr.mxu0 0.0
    %838 = vmatpush1.msra.mxu0 0.0
    %839 = vmatprep.subr.mxu0 0.0
    %840 = vmatpush1.msra.mxu0 0.0
    %841 = vmatprep.subr.mxu0 0.0
    %842 = vmatpush1.msra.mxu0 0.0
    %843 = vmatprep.subr.mxu0 0.0
    %844 = vmatpush1.msra.mxu0 0.0
    %845 = vmatprep.subr.mxu0 0.0
    %846 = vmatpush1.msra.mxu0 0.0
    %847 = vmatprep.subr.mxu0 0.0
    %848 = vmatpush1.msra.mxu0 0.0
    %849 = vmatprep.subr.mxu0 0.0
    %850 = vmatpush1.msra.mxu0 0.0
    %851 = vmatprep.subr.mxu0 0.0
    %852 = vmatpush1.msra.mxu0 0.0
    %853 = vmatprep.subr.mxu0 0.0
    %854 = vmatpush1.msra.mxu0 0.0
    %855 = vmatprep.subr.mxu0 0.0
    %856 = vmatpush1.msra.mxu0 0.0
    %857 = vmatprep.subr.mxu0 0.0
    %858 = vmatpush1.msra.mxu0 0.0
    %859 = vmatprep.subr.mxu0 0.0
    %860 = vmatpush1.msra.mxu0 0.0
    %861 = vmatprep.subr.mxu0 0.0
    %862 = vmatpush1.msra.mxu0 0.0
    %863 = vmatprep.subr.mxu0 0.0
    %864 = vmatpush1.msra.mxu0 0.0
    %865 = vmatprep.subr.mxu0 0.0
    %866 = vmatpush1.msra.mxu0 0.0
    %867 = vmatprep.subr.mxu0 0.0
    %868 = vmatpush1.msra.mxu0 0.0
    %869 = vmatprep.subr.mxu0 0.0
    %870 = vmatpush1.msra.mxu0 0.0
    %871 = vmatprep.subr.mxu0 0.0
    %872 = vmatpush1.msra.mxu0 0.0
    %873 = vmatprep.subr.mxu0 0.0
    %874 = vmatpush1.msra.mxu0 0.0
    %875 = vmatprep.subr.mxu0 0.0
    %876 = vmatpush1.msra.mxu0 0.0
    %877 = vmatprep.subr.mxu0 0.0
    %878 = vmatpush1.msra.mxu0 0.0
    %879 = vmatprep.subr.mxu0 0.0
    %880 = vmatpush1.msra.mxu0 0.0
    %881 = vmatprep.subr.mxu0 0.0
    %882 = vmatpush1.msra.mxu0 0.0
    %883 = vmatprep.subr.mxu0 0.0
    %884 = vmatpush1.msra.mxu0 0.0
    %885 = vmatprep.subr.mxu0 0.0
    %886 = vmatpush1.msra.mxu0 0.0
    %887 = vmatprep.subr.mxu0 0.0
    %888 = vmatpush1.msra.mxu0 0.0
    %889 = vmatprep.subr.mxu0 0.0
    %890 = vmatpush1.msra.mxu0 0.0
    %891 = vmatprep.mubr.f32.mxu0 0.0
    %892 = vmatmul.mubr.f32.gmra.mrb[0].mxu0 %v825
    %v893 = vpop.f32.mrb[0].mxu0
    %v894 = vadd.f32 0.0, %v893
    %v895 = vpop.f32.mrb[0].mxu0
    %896 = vdwg.mxu0
    %v898 = vrot.slane %v894, 2
    %v900 = vadd.f32 %v156, %v898
    %v901 = vxor.u32 %v900, 2147483648
    %v902 = vmul.f32 %v901, 1.442695
    %v903 = vpow.pop %v902
    %v904 = vadd.f32 %v903, 1.0
    %v905 = vrcp.pop %v904
    %v906 = vmul.f32 1.0, %v905
    %v907 = vtanh.pop %v900
    %v909 = vrot.slane %v814, 6
    %v911 = vmul.f32 %v906, %v909
    %913 = vrot.lane.b32.xlu0 %v907, 64
    %v914 = vpop.permute.xlu0 %913
    %v916 = vmul.f32 %v906, %v914
    %918 = vrot.lane.b32.xlu0 %v916, 32
    %v919 = vpop.permute.xlu0 %918
    %v921 = vadd.f32 %v911, %v919
    %v922 = vtanh.pop %v921
    %924 = vrot.lane.b32.xlu0 %v922, 64
    %v925 = vpop.permute.xlu0 %924
    %v927 = vmul.f32 %v906, %v925
    %v928 = vxor.u32 %v158, 2147483648
    %v929 = vmul.f32 %v928, 1.442695
    %v930 = vpow.pop %v929
    %v931 = vadd.f32 %v930, 1.0
    %v932 = vrcp.pop %v931
    %v933 = vmul.f32 1.0, %v932
    %v934 = vtanh.pop %v158
    %936 = vrot.lane.b32.xlu0 %v934, 64
    %v937 = vpop.permute.xlu0 %936
    %v939 = vmul.f32 %v933, %v937
    %v940 = vtanh.pop %v939
    %942 = vrot.lane.b32.xlu0 %v940, 96
    %v943 = vpop.permute.xlu0 %942
    %v945 = vmul.f32 %v933, %v943
    %v946 = vld [vmem:[%s4] sm:$0xff]
    %v947 = vld [vmem:[%s4 + $0x8] sm:$0xff]
    %v948 = vld [vmem:[%s4 + $0x10] sm:$0xff]
    %v949 = vld [vmem:[%s4 + $0x18] sm:$0xff]
    %v950 = vld [vmem:[%s5] sm:$0xff]
    %v951 = vld [vmem:[%s5 + $0x8] sm:$0xff]
    %v952 = vld [vmem:[%s5 + $0x10] sm:$0xff]
    %v953 = vld [vmem:[%s5 + $0x18] sm:$0xff]
    %v955 = vrot.slane %v945, 6
    %956 = vrot.lane.b32.xlu0 %v955, 32
    %v957 = vpop.permute.xlu0 %956
    %v958 = vsel %vm77, %v957, 0
    %960 = vmatprep.subr.mxu0 0.0
    %961 = vmatpush1.msra.mxu0 %v950
    %962 = vmatprep.subr.mxu0 0.0
    %963 = vmatpush1.msra.mxu0 %v951
    %964 = vmatprep.subr.mxu0 0.0
    %965 = vmatpush1.msra.mxu0 %v952
    %966 = vmatprep.subr.mxu0 0.0
    %967 = vmatpush1.msra.mxu0 %v953
    %968 = vmatprep.subr.mxu0 0.0
    %969 = vmatpush1.msra.mxu0 0.0
    %970 = vmatprep.subr.mxu0 0.0
    %971 = vmatpush1.msra.mxu0 0.0
    %972 = vmatprep.subr.mxu0 0.0
    %973 = vmatpush1.msra.mxu0 0.0
    %974 = vmatprep.subr.mxu0 0.0
    %975 = vmatpush1.msra.mxu0 0.0
    %976 = vmatprep.subr.mxu0 0.0
    %977 = vmatpush1.msra.mxu0 0.0
    %978 = vmatprep.subr.mxu0 0.0
    %979 = vmatpush1.msra.mxu0 0.0
    %980 = vmatprep.subr.mxu0 0.0
    %981 = vmatpush1.msra.mxu0 0.0
    %982 = vmatprep.subr.mxu0 0.0
    %983 = vmatpush1.msra.mxu0 0.0
    %984 = vmatprep.subr.mxu0 0.0
    %985 = vmatpush1.msra.mxu0 0.0
    %986 = vmatprep.subr.mxu0 0.0
    %987 = vmatpush1.msra.mxu0 0.0
    %988 = vmatprep.subr.mxu0 0.0
    %989 = vmatpush1.msra.mxu0 0.0
    %990 = vmatprep.subr.mxu0 0.0
    %991 = vmatpush1.msra.mxu0 0.0
    %992 = vmatprep.subr.mxu0 0.0
    %993 = vmatpush1.msra.mxu0 0.0
    %994 = vmatprep.subr.mxu0 0.0
    %995 = vmatpush1.msra.mxu0 0.0
    %996 = vmatprep.subr.mxu0 0.0
    %997 = vmatpush1.msra.mxu0 0.0
    %998 = vmatprep.subr.mxu0 0.0
    %999 = vmatpush1.msra.mxu0 0.0
    %1000 = vmatprep.subr.mxu0 0.0
    %1001 = vmatpush1.msra.mxu0 0.0
    %1002 = vmatprep.subr.mxu0 0.0
    %1003 = vmatpush1.msra.mxu0 0.0
    %1004 = vmatprep.subr.mxu0 0.0
    %1005 = vmatpush1.msra.mxu0 0.0
    %1006 = vmatprep.subr.mxu0 0.0
    %1007 = vmatpush1.msra.mxu0 0.0
    %1008 = vmatprep.subr.mxu0 0.0
    %1009 = vmatpush1.msra.mxu0 0.0
    %1010 = vmatprep.subr.mxu0 0.0
    %1011 = vmatpush1.msra.mxu0 0.0
    %1012 = vmatprep.subr.mxu0 0.0
    %1013 = vmatpush1.msra.mxu0 0.0
    %1014 = vmatprep.subr.mxu0 0.0
    %1015 = vmatpush1.msra.mxu0 0.0
    %1016 = vmatprep.subr.mxu0 0.0
    %1017 = vmatpush1.msra.mxu0 0.0
    %1018 = vmatprep.subr.mxu0 0.0
    %1019 = vmatpush1.msra.mxu0 0.0
    %1020 = vmatprep.subr.mxu0 0.0
    %1021 = vmatpush1.msra.mxu0 0.0
    %1022 = vmatprep.subr.mxu0 0.0
    %1023 = vmatpush1.msra.mxu0 0.0
    %1024 = vmatprep.mubr.f32.mxu0 0.0
    %1025 = vmatmul.mubr.f32.gmra.mrb[0].mxu0 %v958
    %v1026 = vpop.f32.mrb[0].mxu0
    %v1027 = vadd.f32 0.0, %v1026
    %v1028 = vpop.f32.mrb[0].mxu0
    %1029 = vdwg.mxu0
    %v1031 = vrot.slane %v927, 6
    %1032 = vrot.lane.b32.xlu0 %v1031, 32
    %v1033 = vpop.permute.xlu0 %1032
    %v1034 = vsel %vm77, %v1033, 0
    %1036 = vmatprep.subr.mxu0 0.0
    %1037 = vmatpush1.msra.mxu0 %v946
    %1038 = vmatprep.subr.mxu0 0.0
    %1039 = vmatpush1.msra.mxu0 %v947
    %1040 = vmatprep.subr.mxu0 0.0
    %1041 = vmatpush1.msra.mxu0 %v948
    %1042 = vmatprep.subr.mxu0 0.0
    %1043 = vmatpush1.msra.mxu0 %v949
    %1044 = vmatprep.subr.mxu0 0.0
    %1045 = vmatpush1.msra.mxu0 0.0
    %1046 = vmatprep.subr.mxu0 0.0
    %1047 = vmatpush1.msra.mxu0 0.0
    %1048 = vmatprep.subr.mxu0 0.0
    %1049 = vmatpush1.msra.mxu0 0.0
    %1050 = vmatprep.subr.mxu0 0.0
    %1051 = vmatpush1.msra.mxu0 0.0
    %1052 = vmatprep.subr.mxu0 0.0
    %1053 = vmatpush1.msra.mxu0 0.0
    %1054 = vmatprep.subr.mxu0 0.0
    %1055 = vmatpush1.msra.mxu0 0.0
    %1056 = vmatprep.subr.mxu0 0.0
    %1057 = vmatpush1.msra.mxu0 0.0
    %1058 = vmatprep.subr.mxu0 0.0
    %1059 = vmatpush1.msra.mxu0 0.0
    %1060 = vmatprep.subr.mxu0 0.0
    %1061 = vmatpush1.msra.mxu0 0.0
    %1062 = vmatprep.subr.mxu0 0.0
    %1063 = vmatpush1.msra.mxu0 0.0
    %1064 = vmatprep.subr.mxu0 0.0
    %1065 = vmatpush1.msra.mxu0 0.0
    %1066 = vmatprep.subr.mxu0 0.0
    %1067 = vmatpush1.msra.mxu0 0.0
    %1068 = vmatprep.subr.mxu0 0.0
    %1069 = vmatpush1.msra.mxu0 0.0
    %1070 = vmatprep.subr.mxu0 0.0
    %1071 = vmatpush1.msra.mxu0 0.0
    %1072 = vmatprep.subr.mxu0 0.0
    %1073 = vmatpush1.msra.mxu0 0.0
    %1074 = vmatprep.subr.mxu0 0.0
    %1075 = vmatpush1.msra.mxu0 0.0
    %1076 = vmatprep.subr.mxu0 0.0
    %1077 = vmatpush1.msra.mxu0 0.0
    %1078 = vmatprep.subr.mxu0 0.0
    %1079 = vmatpush1.msra.mxu0 0.0
    %1080 = vmatprep.subr.mxu0 0.0
    %1081 = vmatpush1.msra.mxu0 0.0
    %1082 = vmatprep.subr.mxu0 0.0
    %1083 = vmatpush1.msra.mxu0 0.0
    %1084 = vmatprep.subr.mxu0 0.0
    %1085 = vmatpush1.msra.mxu0 0.0
    %1086 = vmatprep.subr.mxu0 0.0
    %1087 = vmatpush1.msra.mxu0 0.0
    %1088 = vmatprep.subr.mxu0 0.0
    %1089 = vmatpush1.msra.mxu0 0.0
    %1090 = vmatprep.subr.mxu0 0.0
    %1091 = vmatpush1.msra.mxu0 0.0
    %1092 = vmatprep.subr.mxu0 0.0
    %1093 = vmatpush1.msra.mxu0 0.0
    %1094 = vmatprep.subr.mxu0 0.0
    %1095 = vmatpush1.msra.mxu0 0.0
    %1096 = vmatprep.subr.mxu0 0.0
    %1097 = vmatpush1.msra.mxu0 0.0
    %1098 = vmatprep.subr.mxu0 0.0
    %1099 = vmatpush1.msra.mxu0 0.0
    %1100 = vmatprep.mubr.f32.mxu0 0.0
    %1101 = vmatmul.mubr.f32.gmra.mrb[0].mxu0 %v1034
    %v1102 = vpop.f32.mrb[0].mxu0
    %v1103 = vadd.f32 %v1027, %v1102
    %v1104 = vpop.f32.mrb[0].mxu0
    %1105 = vdwg.mxu0
    %v1106 = vld [vmem:[%s6] sm:$0x1]
    %v1108 = vlaneseq
    %v1109 = vshrl.u32 %v1108, 7
    %v1110 = vsub.s32 0, %v1109
    %v1111 = vrot.slane %v1106, %v1110
    %v1113 = vadd.f32 %v1103, %v1111
    %vm1114 = vcmask 25600
    %1115 = vst.msk [vmem:[#allocation7] sm:$0x3] %vm1114, %v1113
    // Predicated region
    $region38: #{tpu_custom_call.1} parent=1 // pred_check
      _
    $region39: #{tpu_custom_call.1} parent=1 // pred_check_branch
      %1117 = sbr.rel (0) target = $region41
    $region40: #{tpu_custom_call.1} parent=1 // pred_region
      %s1119 = ssub.s32 32, 32
      %1120 = vsyncadd [#allocation4], %s1119
      %s1122 = sshll.u32 [#allocation7], 4
      %s1123 = int_to_ptr.vmem [resolvable:$true] %s1122
      %1125 = dma.vmem_to_hbm [thread:$0]  %s1123, 32, %s7, [#allocation4]
    $region41: #{tpu_custom_call.1} parent=1 // pred_fallthru
      _
    // Predicated region
    $region42: #{tpu_custom_call.1} parent=1 // pred_check
      _
    $region43: #{tpu_custom_call.1} parent=1 // pred_check_branch
      %1127 = sbr.rel (0) target = $region45
    $region44: #{tpu_custom_call.1} parent=1 // pred_region
      %1128 = dma.done [#allocation4], 32
    $region45: #{tpu_custom_call.1} parent=1 // pred_fallthru
      _
    %1129 = vsyncpa [#allocation3], 1
    %1130 = vsyncpa [#allocation6], 1
    %1131 = vsyncpa [#allocation4], 1

</llo_original>
